<compile_context>
chip_gen: v6e
topology: v6e:2x2x1
jax: 0.10.0
libtpu: 0.0.40
codegen_flags: <defaults>
</compile_context>

<pallas_src>
import functools

import jax
import jax.numpy as jnp
from jax.experimental import pallas as pl
from jax.experimental.pallas import tpu as pltpu


# ---------------------------------------------------------------------------
# Kernel
# ---------------------------------------------------------------------------
def _make_fused_kernel(n_tail_layers):
    """Kernel computing both Q-networks in one pass over packed weights.

    Ref order: state, action, W1_state, W1_action, b1,
               (W_i, b_i) for each of the n_tail_layers block-diagonal layers,
               output (B, 2).
    """

    def kernel(s_ref, a_ref, *refs):
        *p, o_ref = refs
        # Layer 1 with the concat fused into two matmuls:
        #   cat([s, a]) @ W1  ==  s @ W1[:S] + a @ W1[S:]
        h = (jnp.dot(s_ref[...], p[0][...], preferred_element_type=jnp.float32)
             + jnp.dot(a_ref[...], p[1][...], preferred_element_type=jnp.float32)
             + p[2][...])
        h = jnp.maximum(h, 0.0)
        # Remaining layers (block-diagonal => the two nets stay independent).
        for i in range(n_tail_layers):
            w = p[3 + 2 * i][...]
            b = p[4 + 2 * i][...]
            h = jnp.dot(h, w, preferred_element_type=jnp.float32) + b
            if i < n_tail_layers - 1:  # ReLU on all but the final layer
                h = jnp.maximum(h, 0.0)
        o_ref[...] = h.astype(o_ref.dtype)

    return kernel


# ---------------------------------------------------------------------------
# Wrapper
# ---------------------------------------------------------------------------
def double_q_forward(state, action, packed_params):
    """packed_params: output of pack_double_q_params (list of f32 arrays).

    Returns (q1, q2), each (B, 1) float32, matching PyTorch DoubleQFunc.forward.
    """
    state = state.astype(jnp.float32)
    action = action.astype(jnp.float32)
    B = state.shape[0]
    n_tail = (len(packed_params) - 3) // 2
    kernel = _make_fused_kernel(n_tail)

    inputs = [state, action, *packed_params]

    # Advisory cost estimate: tiny kernel, don't serialize surrounding ops.
    h2 = packed_params[0].shape[1]
    flops = 2 * B * (state.shape[1] + action.shape[1]) * h2
    for i in range(n_tail):
        w = packed_params[3 + 2 * i]
        flops += 2 * B * w.shape[0] * w.shape[1]
    bytes_accessed = sum(int(x.size) * x.dtype.itemsize for x in inputs) + B * 2 * 4

    vmem_spec = pl.BlockSpec(memory_space=pltpu.MemorySpace.VMEM)
    out = pl.pallas_call(
        kernel,
        out_shape=jax.ShapeDtypeStruct((B, 2), jnp.float32),
        in_specs=[vmem_spec] * len(inputs),
        out_specs=vmem_spec,
        cost_estimate=pl.CostEstimate(
            flops=int(flops), transcendentals=0, bytes_accessed=int(bytes_accessed)
        ),
    )(*inputs)

    return out[:, 0:1], out[:, 1:2]


double_q_forward_jit = jax.jit(double_q_forward)


# ---------------------------------------------------------------------------
# Parameter init + one-time packing (block-diagonal fusion of the two nets)
# ---------------------------------------------------------------------------
def init_double_q_params(key, state_dim, action_dim, num_hidden_layers, hidden_size):
    """Synthetic init (uniform(+-1/sqrt(fan_in)), like torch's Linear default).

    Returns list of (w, b); w: (2, d_in, d_out), b: (2, 1, d_out); leading axis
    indexes [network1, network2].
    """
    dims = [state_dim + action_dim] + [hidden_size] * (num_hidden_layers + 1) + [1]
    params = []
    for i in range(len(dims) - 1):
        d_in, d_out = dims[i], dims[i + 1]
        key, kw, kb = jax.random.split(key, 3)
        bound = 1.0 / jnp.sqrt(jnp.float32(d_in))
        w = jax.random.uniform(kw, (2, d_in, d_out), jnp.float32, -bound, bound)
        b = jax.random.uniform(kb, (2, 1, d_out), jnp.float32, -bound, bound)
        params.append((w, b))
    return params


def pack_double_q_params(params, state_dim):
    """Pack per-network params into the fused layout (done once at init time).

    Layer 1: concat along out_features, then split rows into state/action parts.
    Remaining layers: block-diagonal weights so the two nets stay independent.
    """
    packed = []
    w0, b0 = params[0]                                         # (2, S+A, H), (2, 1, H)
    w0_cat = jnp.concatenate([w0[0], w0[1]], axis=1)           # (S+A, 2H)
    packed.append(jnp.asarray(w0_cat[:state_dim]))             # (S, 2H)
    packed.append(jnp.asarray(w0_cat[state_dim:]))             # (A, 2H)
    packed.append(jnp.concatenate([b0[0], b0[1]], axis=1))     # (1, 2H)
    for (w, b) in params[1:]:
        d_in, d_out = w.shape[1], w.shape[2]
        wb = jnp.zeros((2 * d_in, 2 * d_out), jnp.float32)
        wb = wb.at[:d_in, :d_out].set(w[0])
        wb = wb.at[d_in:, d_out:].set(w[1])
        packed.append(wb)                                      # (2*d_in, 2*d_out)
        packed.append(jnp.concatenate([b[0], b[1]], axis=1))   # (1, 2*d_out)
    return [jax.device_put(p) for p in packed]


# ---------------------------------------------------------------------------
# Plain-JAX reference (unfused) for correctness checking
# ---------------------------------------------------------------------------
def _reference_forward(state, action, params):
    x = jnp.concatenate([state, action], axis=1).astype(jnp.float32)
    outs = []
    for n in range(2):
        h = x
        for i, (w, b) in enumerate(params):
            h = h @ w[n] + b[n]
            if i < len(params) - 1:
                h = jnp.maximum(h, 0.0)
        outs.append(h)
    return outs[0], outs[1]


if __name__ == "__main__":
    # Small shapes consistent with the module: state_dim=6, action_dim=2,
    # num_hidden_layers=2, hidden_size=32, batch=8.
    state_dim, action_dim = 6, 2
    num_hidden_layers, hidden_size = 2, 32
    batch = 8

    key = jax.random.PRNGKey(0)
    key, ks, ka = jax.random.split(key, 3)
    state = jax.random.normal(ks, (batch, state_dim), jnp.float32)
    action = jax.random.normal(ka, (batch, action_dim), jnp.float32)

    params = init_double_q_params(key, state_dim, action_dim,
                                  num_hidden_layers, hidden_size)
    packed = pack_double_q_params(params, state_dim)   # one-time fusion packing

    q1, q2 = double_q_forward_jit(state, action, packed)
    q1 = jax.block_until_ready(q1)
    q2 = jax.block_until_ready(q2)

    r1, r2 = _reference_forward(state, action, params)
    assert q1.shape == (batch, 1) and q2.shape == (batch, 1)
    assert jnp.allclose(q1, r1, atol=2e-5, rtol=1e-4)
    assert jnp.allclose(q2, r2, atol=2e-5, rtol=1e-4)

    print("KERNEL_OK")
</pallas_src>

<mosaic_0001>
module attributes {stable_mosaic.version = 11 : i64} {
  func.func @kernel(%arg0: memref<8x6xf32, #tpu.memory_space<vmem>>, %arg1: memref<8x2xf32, #tpu.memory_space<vmem>>, %arg2: memref<6x64xf32, #tpu.memory_space<vmem>>, %arg3: memref<2x64xf32, #tpu.memory_space<vmem>>, %arg4: memref<1x64xf32, #tpu.memory_space<vmem>>, %arg5: memref<64x64xf32, #tpu.memory_space<vmem>>, %arg6: memref<1x64xf32, #tpu.memory_space<vmem>>, %arg7: memref<64x64xf32, #tpu.memory_space<vmem>>, %arg8: memref<1x64xf32, #tpu.memory_space<vmem>>, %arg9: memref<64x2xf32, #tpu.memory_space<vmem>>, %arg10: memref<1x2xf32, #tpu.memory_space<vmem>>, %arg11: memref<8x2xf32, #tpu.memory_space<vmem>>) attributes {dimension_semantics = [], scalar_prefetch = 0 : i64, scratch_operands = 0 : i64, tpu.core_type = #tpu.core_type<tc>} {
    %c0 = arith.constant 0 : index
    %c0_0 = arith.constant 0 : index
    %0 = vector.load %arg0[%c0, %c0_0] : memref<8x6xf32, #tpu.memory_space<vmem>>, vector<8x6xf32>
    %c0_1 = arith.constant 0 : index
    %c0_2 = arith.constant 0 : index
    %1 = vector.load %arg2[%c0_1, %c0_2] : memref<6x64xf32, #tpu.memory_space<vmem>>, vector<6x64xf32>
    %cst = arith.constant dense<0.000000e+00> : vector<8x64xf32>
    %2 = tpu.matmul %0, %1, %cst {dimension_numbers = #tpu.dot_dimension_numbers<[1], [0], [0], [1], [0, 0, 1, 1], [], []>} : vector<8x6xf32>, vector<6x64xf32>, vector<8x64xf32> -> vector<8x64xf32>
    %c0_3 = arith.constant 0 : index
    %c0_4 = arith.constant 0 : index
    %3 = vector.load %arg1[%c0_3, %c0_4] : memref<8x2xf32, #tpu.memory_space<vmem>>, vector<8x2xf32>
    %c0_5 = arith.constant 0 : index
    %c0_6 = arith.constant 0 : index
    %4 = vector.load %arg3[%c0_5, %c0_6] : memref<2x64xf32, #tpu.memory_space<vmem>>, vector<2x64xf32>
    %cst_7 = arith.constant dense<0.000000e+00> : vector<8x64xf32>
    %5 = tpu.matmul %3, %4, %cst_7 {dimension_numbers = #tpu.dot_dimension_numbers<[1], [0], [0], [1], [0, 0, 1, 1], [], []>} : vector<8x2xf32>, vector<2x64xf32>, vector<8x64xf32> -> vector<8x64xf32>
    %6 = arith.addf %2, %5 : vector<8x64xf32>
    %c0_8 = arith.constant 0 : index
    %c0_9 = arith.constant 0 : index
    %7 = vector.load %arg4[%c0_8, %c0_9] : memref<1x64xf32, #tpu.memory_space<vmem>>, vector<1x64xf32>
    %8 = vector.broadcast %7 : vector<1x64xf32> to vector<8x64xf32>
    %9 = arith.addf %6, %8 : vector<8x64xf32>
    %cst_10 = arith.constant 0.000000e+00 : f32
    %10 = vector.broadcast %cst_10 : f32 to vector<8x64xf32>
    %11 = arith.maximumf %9, %10 : vector<8x64xf32>
    %c0_11 = arith.constant 0 : index
    %c0_12 = arith.constant 0 : index
    %12 = vector.load %arg5[%c0_11, %c0_12] : memref<64x64xf32, #tpu.memory_space<vmem>>, vector<64x64xf32>
    %c0_13 = arith.constant 0 : index
    %c0_14 = arith.constant 0 : index
    %13 = vector.load %arg6[%c0_13, %c0_14] : memref<1x64xf32, #tpu.memory_space<vmem>>, vector<1x64xf32>
    %cst_15 = arith.constant dense<0.000000e+00> : vector<8x64xf32>
    %14 = tpu.matmul %11, %12, %cst_15 {dimension_numbers = #tpu.dot_dimension_numbers<[1], [0], [0], [1], [0, 0, 1, 1], [], []>} : vector<8x64xf32>, vector<64x64xf32>, vector<8x64xf32> -> vector<8x64xf32>
    %15 = vector.broadcast %13 : vector<1x64xf32> to vector<8x64xf32>
    %16 = arith.addf %14, %15 : vector<8x64xf32>
    %cst_16 = arith.constant 0.000000e+00 : f32
    %17 = vector.broadcast %cst_16 : f32 to vector<8x64xf32>
    %18 = arith.maximumf %16, %17 : vector<8x64xf32>
    %c0_17 = arith.constant 0 : index
    %c0_18 = arith.constant 0 : index
    %19 = vector.load %arg7[%c0_17, %c0_18] : memref<64x64xf32, #tpu.memory_space<vmem>>, vector<64x64xf32>
    %c0_19 = arith.constant 0 : index
    %c0_20 = arith.constant 0 : index
    %20 = vector.load %arg8[%c0_19, %c0_20] : memref<1x64xf32, #tpu.memory_space<vmem>>, vector<1x64xf32>
    %cst_21 = arith.constant dense<0.000000e+00> : vector<8x64xf32>
    %21 = tpu.matmul %18, %19, %cst_21 {dimension_numbers = #tpu.dot_dimension_numbers<[1], [0], [0], [1], [0, 0, 1, 1], [], []>} : vector<8x64xf32>, vector<64x64xf32>, vector<8x64xf32> -> vector<8x64xf32>
    %22 = vector.broadcast %20 : vector<1x64xf32> to vector<8x64xf32>
    %23 = arith.addf %21, %22 : vector<8x64xf32>
    %cst_22 = arith.constant 0.000000e+00 : f32
    %24 = vector.broadcast %cst_22 : f32 to vector<8x64xf32>
    %25 = arith.maximumf %23, %24 : vector<8x64xf32>
    %c0_23 = arith.constant 0 : index
    %c0_24 = arith.constant 0 : index
    %26 = vector.load %arg9[%c0_23, %c0_24] : memref<64x2xf32, #tpu.memory_space<vmem>>, vector<64x2xf32>
    %c0_25 = arith.constant 0 : index
    %c0_26 = arith.constant 0 : index
    %27 = vector.load %arg10[%c0_25, %c0_26] : memref<1x2xf32, #tpu.memory_space<vmem>>, vector<1x2xf32>
    %cst_27 = arith.constant dense<0.000000e+00> : vector<8x2xf32>
    %28 = tpu.matmul %25, %26, %cst_27 {dimension_numbers = #tpu.dot_dimension_numbers<[1], [0], [0], [1], [0, 0, 1, 1], [], []>} : vector<8x64xf32>, vector<64x2xf32>, vector<8x2xf32> -> vector<8x2xf32>
    %29 = vector.broadcast %27 : vector<1x2xf32> to vector<8x2xf32>
    %30 = arith.addf %28, %29 : vector<8x2xf32>
    %c0_28 = arith.constant 0 : index
    %c0_29 = arith.constant 0 : index
    %31 = vector.load %arg11[%c0_28, %c0_29] : memref<8x2xf32, #tpu.memory_space<vmem>>, vector<8x2xf32>
    tpu.vector_store %arg11[%c0_28, %c0_29], %30 {strides = array<i32>} : memref<8x2xf32, #tpu.memory_space<vmem>>, vector<8x2xf32>,
    return
  }
}

</mosaic_0001>

<llo_original>
// kernel: double_q_forward.1
$region0: #{double_q_forward.1}
  #allocation0 [shape = 'u32[]', space=smem, size = 0x4, offset = 0x4, fixed_abs, tag = 'smem constant byte address 0x4 - core index']
  #allocation1 [shape = 'u32[144,128]{1,0:T(1,128)}', space=vmem, size = 0x12000, scoped, tag = 'internal scratch']
  %s0 = inlined_call_operand.vmem [shape: f32[8,6], index: 0, kind: input, shape index: {}]
  %s1 = inlined_call_operand.vmem [shape: f32[8,2], index: 1, kind: input, shape index: {}]
  %s2 = inlined_call_operand.vmem [shape: f32[6,64], index: 2, kind: input, shape index: {}]
  %s3 = inlined_call_operand.vmem [shape: f32[2,64], index: 3, kind: input, shape index: {}]
  %s4 = inlined_call_operand.vmem [shape: f32[1,64], index: 4, kind: input, shape index: {}]
  %s5 = inlined_call_operand.vmem [shape: f32[64,64], index: 5, kind: input, shape index: {}]
  %s6 = inlined_call_operand.vmem [shape: f32[1,64], index: 6, kind: input, shape index: {}]
  %s7 = inlined_call_operand.hbm [shape: f32[64,64], index: 7, kind: input, shape index: {}]
  %s8 = inlined_call_operand.vmem [shape: f32[1,64], index: 8, kind: input, shape index: {}]
  %s9 = inlined_call_operand.vmem [shape: f32[64,2], index: 9, kind: input, shape index: {}]
  %s10 = inlined_call_operand.vmem [shape: f32[1,2], index: 10, kind: input, shape index: {}]
  %s11 = inlined_call_operand.vmem [shape: f32[8,2], index: 11, kind: output, shape index: {}]
  %s12 = sld [smem:[#allocation0]]
  $region58: #{double_q_forward.1} parent=0
    _
  %s14 = ssub.s32 1, %s12
  %s15 = scalar_select 0, %s14, %s12
  $region1: #{double_q_forward.1} parent=0
    #allocation2 [shape = 'u8[32768]{0}', space=vmem, size = 0x8000, scoped, tag = 'input window, operand 7, single buffered']
    #allocation3 [shape = 's32[1]{0}', space=sflag, size = 0x4, scoped, tag = 'scoped memory for double_q_forward.1']
    %16 = vsyncpa [#allocation3], 0
    // Predicated region
    $region2: #{double_q_forward.1} parent=1 // pred_check
      _
    $region3: #{double_q_forward.1} parent=1 // pred_check_branch
      %18 = sbr.rel (0) target = $region5
    $region4: #{double_q_forward.1} parent=1 // pred_region
      _
    $region5: #{double_q_forward.1} parent=1 // pred_fallthru
      _
    // Predicated region
    $region6: #{double_q_forward.1} parent=1 // pred_check
      _
    $region7: #{double_q_forward.1} parent=1 // pred_check_branch
      %20 = sbr.rel (0) target = $region9
    $region8: #{double_q_forward.1} parent=1 // pred_region
      _
    $region9: #{double_q_forward.1} parent=1 // pred_fallthru
      _
    // Predicated region
    $region10: #{double_q_forward.1} parent=1 // pred_check
      _
    $region11: #{double_q_forward.1} parent=1 // pred_check_branch
      %22 = sbr.rel (0) target = $region13
    $region12: #{double_q_forward.1} parent=1 // pred_region
      _
    $region13: #{double_q_forward.1} parent=1 // pred_fallthru
      _
    // Predicated region
    $region14: #{double_q_forward.1} parent=1 // pred_check
      _
    $region15: #{double_q_forward.1} parent=1 // pred_check_branch
      %24 = sbr.rel (0) target = $region17
    $region16: #{double_q_forward.1} parent=1 // pred_region
      _
    $region17: #{double_q_forward.1} parent=1 // pred_fallthru
      _
    // Predicated region
    $region18: #{double_q_forward.1} parent=1 // pred_check
      _
    $region19: #{double_q_forward.1} parent=1 // pred_check_branch
      %26 = sbr.rel (0) target = $region21
    $region20: #{double_q_forward.1} parent=1 // pred_region
      _
    $region21: #{double_q_forward.1} parent=1 // pred_fallthru
      _
    // Predicated region
    $region22: #{double_q_forward.1} parent=1 // pred_check
      _
    $region23: #{double_q_forward.1} parent=1 // pred_check_branch
      %28 = sbr.rel (0) target = $region25
    $region24: #{double_q_forward.1} parent=1 // pred_region
      _
    $region25: #{double_q_forward.1} parent=1 // pred_fallthru
      _
    // Predicated region
    $region26: #{double_q_forward.1} parent=1 // pred_check
      _
    $region27: #{double_q_forward.1} parent=1 // pred_check_branch
      %30 = sbr.rel (0) target = $region29
    $region28: #{double_q_forward.1} parent=1 // pred_region
      _
    $region29: #{double_q_forward.1} parent=1 // pred_fallthru
      _
    // Predicated region
    $region30: #{double_q_forward.1} parent=1 // pred_check
      _
    $region31: #{double_q_forward.1} parent=1 // pred_check_branch
      %32 = sbr.rel (0) target = $region33
    $region32: #{double_q_forward.1} parent=1 // pred_region
      %s34 = ssub.s32 1024, 1024
      %35 = vsyncadd [#allocation3], %s34
      %s36 = sshll.u32 [#allocation2], 4
      %s37 = int_to_ptr.vmem [resolvable:$true] %s36
      %42 = dma.hbm_to_vmem [thread:$0]  %s7, 1024, %s37, [#allocation3], 128, 128, 8
    $region33: #{double_q_forward.1} parent=1 // pred_fallthru
      _
    // Predicated region
    $region34: #{double_q_forward.1} parent=1 // pred_check
      _
    $region35: #{double_q_forward.1} parent=1 // pred_check_branch
      %44 = sbr.rel (0) target = $region37
    $region36: #{double_q_forward.1} parent=1 // pred_region
      _
    $region37: #{double_q_forward.1} parent=1 // pred_fallthru
      _
    // Predicated region
    $region38: #{double_q_forward.1} parent=1 // pred_check
      _
    $region39: #{double_q_forward.1} parent=1 // pred_check_branch
      %46 = sbr.rel (0) target = $region41
    $region40: #{double_q_forward.1} parent=1 // pred_region
      _
    $region41: #{double_q_forward.1} parent=1 // pred_fallthru
      _
    // Predicated region
    $region42: #{double_q_forward.1} parent=1 // pred_check
      _
    $region43: #{double_q_forward.1} parent=1 // pred_check_branch
      %48 = sbr.rel (0) target = $region45
    $region44: #{double_q_forward.1} parent=1 // pred_region
      _
    $region45: #{double_q_forward.1} parent=1 // pred_fallthru
      _
    // Predicated region
    $region46: #{double_q_forward.1} parent=1 // pred_check
      _
    $region47: #{double_q_forward.1} parent=1 // pred_check_branch
      %50 = sbr.rel (0) target = $region49
    $region48: #{double_q_forward.1} parent=1 // pred_region
      %51 = dma.done [#allocation3], 1024
    $region49: #{double_q_forward.1} parent=1 // pred_fallthru
      _
    %v52 = vld [vmem:[%s0] sm:$0xff]
    %v53 = vld [vmem:[%s2] sm:$0x3f]
    %v54 = vld [vmem:[%s1] sm:$0xff]
    %v55 = vld [vmem:[%s3] sm:$0x3]
    %vm56 = vcmask 15360
    %v58 = vsel %vm56, %v54, 0
    %vm60 = vcmask 1041408
    %v62 = vsel %vm60, %v55, 0
    %64 = vmatprep.subr.mxu0 0.0
    %65 = vmatpush1.msra.mxu0 0.0
    %66 = vmatprep.subr.mxu0 0.0
    %67 = vmatpush1.msra.mxu0 0.0
    %68 = vmatprep.subr.mxu0 0.0
    %69 = vmatpush1.msra.mxu0 0.0
    %70 = vmatprep.subr.mxu0 0.0
    %71 = vmatpush1.msra.mxu0 0.0
    %72 = vmatprep.subr.mxu0 0.0
    %73 = vmatpush1.msra.mxu0 0.0
    %74 = vmatprep.subr.mxu0 0.0
    %75 = vmatpush1.msra.mxu0 0.0
    %76 = vmatprep.subr.mxu0 0.0
    %77 = vmatpush1.msra.mxu0 0.0
    %78 = vmatprep.subr.mxu0 0.0
    %79 = vmatpush1.msra.mxu0 0.0
    %80 = vmatprep.subr.mxu0 0.0
    %81 = vmatpush1.msra.mxu0 0.0
    %82 = vmatprep.subr.mxu0 0.0
    %83 = vmatpush1.msra.mxu0 0.0
    %84 = vmatprep.subr.mxu0 0.0
    %85 = vmatpush1.msra.mxu0 0.0
    %86 = vmatprep.subr.mxu0 0.0
    %87 = vmatpush1.msra.mxu0 0.0
    %88 = vmatprep.subr.mxu0 0.0
    %89 = vmatpush1.msra.mxu0 0.0
    %90 = vmatprep.subr.mxu0 0.0
    %91 = vmatpush1.msra.mxu0 0.0
    %92 = vmatprep.subr.mxu0 0.0
    %93 = vmatpush1.msra.mxu0 0.0
    %94 = vmatprep.subr.mxu0 0.0
    %95 = vmatpush1.msra.mxu0 %v62
    %96 = vmatprep.subr.mxu0 0.0
    %97 = vmatpush2.msra.mxu0 0.0
    %98 = vmatprep.subr.mxu0 0.0
    %99 = vmatpush2.msra.mxu0 0.0
    %100 = vmatprep.subr.mxu0 0.0
    %101 = vmatpush2.msra.mxu0 0.0
    %102 = vmatprep.subr.mxu0 0.0
    %103 = vmatpush2.msra.mxu0 0.0
    %104 = vmatprep.subr.mxu0 0.0
    %105 = vmatpush2.msra.mxu0 0.0
    %106 = vmatprep.subr.mxu0 0.0
    %107 = vmatpush2.msra.mxu0 0.0
    %108 = vmatprep.subr.mxu0 0.0
    %109 = vmatpush2.msra.mxu0 0.0
    %110 = vmatprep.subr.mxu0 0.0
    %111 = vmatpush2.msra.mxu0 0.0
    %112 = vmatprep.subr.mxu0 0.0
    %113 = vmatpush2.msra.mxu0 0.0
    %114 = vmatprep.subr.mxu0 0.0
    %115 = vmatpush2.msra.mxu0 0.0
    %116 = vmatprep.subr.mxu0 0.0
    %117 = vmatpush2.msra.mxu0 0.0
    %118 = vmatprep.subr.mxu0 0.0
    %119 = vmatpush2.msra.mxu0 0.0
    %120 = vmatprep.subr.mxu0 0.0
    %121 = vmatpush2.msra.mxu0 0.0
    %122 = vmatprep.subr.mxu0 0.0
    %123 = vmatpush2.msra.mxu0 0.0
    %124 = vmatprep.subr.mxu0 0.0
    %125 = vmatpush2.msra.mxu0 0.0
    %126 = vmatprep.subr.mxu0 0.0
    %127 = vmatpush2.msra.mxu0 0.0
    %128 = vmatprep.mubr.f32.mxu0 0.0
    %129 = vmatmul.mubr.f32.gmra.mxu0 %v58
    %v130 = vpop.f32.mrf.mxu0
    %v131 = vadd.f32 0.0, %v130
    %v132 = vpop.f32.mrf.mxu0
    %133 = vdwg.mxu0
    %vm134 = vcmask 48128
    %v136 = vsel %vm134, %v52, 0
    %vm138 = vcmask 1045504
    %v140 = vsel %vm138, %v53, 0
    %142 = vmatprep.subr.mxu0 0.0
    %143 = vmatpush1.msra.mxu0 0.0
    %144 = vmatprep.subr.mxu0 0.0
    %145 = vmatpush1.msra.mxu0 0.0
    %146 = vmatprep.subr.mxu0 0.0
    %147 = vmatpush1.msra.mxu0 0.0
    %148 = vmatprep.subr.mxu0 0.0
    %149 = vmatpush1.msra.mxu0 0.0
    %150 = vmatprep.subr.mxu0 0.0
    %151 = vmatpush1.msra.mxu0 0.0
    %152 = vmatprep.subr.mxu0 0.0
    %153 = vmatpush1.msra.mxu0 0.0
    %154 = vmatprep.subr.mxu0 0.0
    %155 = vmatpush1.msra.mxu0 0.0
    %156 = vmatprep.subr.mxu0 0.0
    %157 = vmatpush1.msra.mxu0 0.0
    %158 = vmatprep.subr.mxu0 0.0
    %159 = vmatpush1.msra.mxu0 0.0
    %160 = vmatprep.subr.mxu0 0.0
    %161 = vmatpush1.msra.mxu0 0.0
    %162 = vmatprep.subr.mxu0 0.0
    %163 = vmatpush1.msra.mxu0 0.0
    %164 = vmatprep.subr.mxu0 0.0
    %165 = vmatpush1.msra.mxu0 0.0
    %166 = vmatprep.subr.mxu0 0.0
    %167 = vmatpush1.msra.mxu0 0.0
    %168 = vmatprep.subr.mxu0 0.0
    %169 = vmatpush1.msra.mxu0 0.0
    %170 = vmatprep.subr.mxu0 0.0
    %171 = vmatpush1.msra.mxu0 0.0
    %172 = vmatprep.subr.mxu0 0.0
    %173 = vmatpush1.msra.mxu0 %v140
    %174 = vmatprep.subr.mxu0 0.0
    %175 = vmatpush2.msra.mxu0 0.0
    %176 = vmatprep.subr.mxu0 0.0
    %177 = vmatpush2.msra.mxu0 0.0
    %178 = vmatprep.subr.mxu0 0.0
    %179 = vmatpush2.msra.mxu0 0.0
    %180 = vmatprep.subr.mxu0 0.0
    %181 = vmatpush2.msra.mxu0 0.0
    %182 = vmatprep.subr.mxu0 0.0
    %183 = vmatpush2.msra.mxu0 0.0
    %184 = vmatprep.subr.mxu0 0.0
    %185 = vmatpush2.msra.mxu0 0.0
    %186 = vmatprep.subr.mxu0 0.0
    %187 = vmatpush2.msra.mxu0 0.0
    %188 = vmatprep.subr.mxu0 0.0
    %189 = vmatpush2.msra.mxu0 0.0
    %190 = vmatprep.subr.mxu0 0.0
    %191 = vmatpush2.msra.mxu0 0.0
    %192 = vmatprep.subr.mxu0 0.0
    %193 = vmatpush2.msra.mxu0 0.0
    %194 = vmatprep.subr.mxu0 0.0
    %195 = vmatpush2.msra.mxu0 0.0
    %196 = vmatprep.subr.mxu0 0.0
    %197 = vmatpush2.msra.mxu0 0.0
    %198 = vmatprep.subr.mxu0 0.0
    %199 = vmatpush2.msra.mxu0 0.0
    %200 = vmatprep.subr.mxu0 0.0
    %201 = vmatpush2.msra.mxu0 0.0
    %202 = vmatprep.subr.mxu0 0.0
    %203 = vmatpush2.msra.mxu0 0.0
    %204 = vmatprep.subr.mxu0 0.0
    %205 = vmatpush2.msra.mxu0 0.0
    %206 = vmatprep.mubr.f32.mxu0 0.0
    %207 = vmatmul.mubr.f32.gmra.mxu0 %v136
    %v208 = vpop.f32.mrf.mxu0
    %v209 = vadd.f32 %v131, %v208
    %v210 = vpop.f32.mrf.mxu0
    %211 = vdwg.mxu0
    %v212 = vld [vmem:[%s4] sm:$0x1]
    %v214 = vlaneseq
    %v215 = vshrl.u32 %v214, 7
    %v216 = vsub.s32 0, %v215
    %v217 = vrot.slane %v212, %v216
    %v219 = vadd.f32 %v209, %v217
    %v220 = vmax.f32 %v219, 0.0
    %v221 = vld [vmem:[%s5] sm:$0xff]
    %v222 = vld [vmem:[%s5 + $0x8] sm:$0xff]
    %v223 = vld [vmem:[%s5 + $0x10] sm:$0xff]
    %v224 = vld [vmem:[%s5 + $0x18] sm:$0xff]
    %v225 = vld [vmem:[%s5 + $0x20] sm:$0xff]
    %v226 = vld [vmem:[%s5 + $0x28] sm:$0xff]
    %v227 = vld [vmem:[%s5 + $0x30] sm:$0xff]
    %v228 = vld [vmem:[%s5 + $0x38] sm:$0xff]
    %v229 = vld [vmem:[%s6] sm:$0x1]
    %v231 = vlaneseq
    %v232 = vshrl.u32 %v231, 7
    %v233 = vsub.s32 0, %v232
    %v234 = vrot.slane %v229, %v233
    %vm236 = vcmask 523264
    %v238 = vsel %vm236, %v220, 0
    %240 = vmatprep.subr.mxu0 0.0
    %241 = vmatpush1.msra.mxu0 0.0
    %242 = vmatprep.subr.mxu0 0.0
    %243 = vmatpush1.msra.mxu0 0.0
    %244 = vmatprep.subr.mxu0 0.0
    %245 = vmatpush1.msra.mxu0 0.0
    %246 = vmatprep.subr.mxu0 0.0
    %247 = vmatpush1.msra.mxu0 0.0
    %248 = vmatprep.subr.mxu0 0.0
    %249 = vmatpush1.msra.mxu0 0.0
    %250 = vmatprep.subr.mxu0 0.0
    %251 = vmatpush1.msra.mxu0 0.0
    %252 = vmatprep.subr.mxu0 0.0
    %253 = vmatpush1.msra.mxu0 0.0
    %254 = vmatprep.subr.mxu0 0.0
    %255 = vmatpush1.msra.mxu0 0.0
    %256 = vmatprep.subr.mxu0 0.0
    %257 = vmatpush1.msra.mxu0 %v228
    %258 = vmatprep.subr.mxu0 0.0
    %259 = vmatpush1.msra.mxu0 %v227
    %260 = vmatprep.subr.mxu0 0.0
    %261 = vmatpush1.msra.mxu0 %v226
    %262 = vmatprep.subr.mxu0 0.0
    %263 = vmatpush1.msra.mxu0 %v225
    %264 = vmatprep.subr.mxu0 0.0
    %265 = vmatpush1.msra.mxu0 %v224
    %266 = vmatprep.subr.mxu0 0.0
    %267 = vmatpush1.msra.mxu0 %v223
    %268 = vmatprep.subr.mxu0 0.0
    %269 = vmatpush1.msra.mxu0 %v222
    %270 = vmatprep.subr.mxu0 0.0
    %271 = vmatpush1.msra.mxu0 %v221
    %272 = vmatprep.subr.mxu0 0.0
    %273 = vmatpush2.msra.mxu0 0.0
    %274 = vmatprep.subr.mxu0 0.0
    %275 = vmatpush2.msra.mxu0 0.0
    %276 = vmatprep.subr.mxu0 0.0
    %277 = vmatpush2.msra.mxu0 0.0
    %278 = vmatprep.subr.mxu0 0.0
    %279 = vmatpush2.msra.mxu0 0.0
    %280 = vmatprep.subr.mxu0 0.0
    %281 = vmatpush2.msra.mxu0 0.0
    %282 = vmatprep.subr.mxu0 0.0
    %283 = vmatpush2.msra.mxu0 0.0
    %284 = vmatprep.subr.mxu0 0.0
    %285 = vmatpush2.msra.mxu0 0.0
    %286 = vmatprep.subr.mxu0 0.0
    %287 = vmatpush2.msra.mxu0 0.0
    %288 = vmatprep.subr.mxu0 0.0
    %289 = vmatpush2.msra.mxu0 0.0
    %290 = vmatprep.subr.mxu0 0.0
    %291 = vmatpush2.msra.mxu0 0.0
    %292 = vmatprep.subr.mxu0 0.0
    %293 = vmatpush2.msra.mxu0 0.0
    %294 = vmatprep.subr.mxu0 0.0
    %295 = vmatpush2.msra.mxu0 0.0
    %296 = vmatprep.subr.mxu0 0.0
    %297 = vmatpush2.msra.mxu0 0.0
    %298 = vmatprep.subr.mxu0 0.0
    %299 = vmatpush2.msra.mxu0 0.0
    %300 = vmatprep.subr.mxu0 0.0
    %301 = vmatpush2.msra.mxu0 0.0
    %302 = vmatprep.subr.mxu0 0.0
    %303 = vmatpush2.msra.mxu0 0.0
    %304 = vmatprep.mubr.f32.mxu0 0.0
    %305 = vmatmul.mubr.f32.gmra.mxu0 %v238
    %v306 = vpop.f32.mrf.mxu0
    %v307 = vadd.f32 %v234, %v306
    %v308 = vpop.f32.mrf.mxu0
    %309 = vdwg.mxu0
    %v310 = vmax.f32 %v307, 0.0
    %v311 = vld [vmem:[#allocation2] sm:$0xff]
    %v312 = vld [vmem:[#allocation2 + $0x8] sm:$0xff]
    %v313 = vld [vmem:[#allocation2 + $0x10] sm:$0xff]
    %v314 = vld [vmem:[#allocation2 + $0x18] sm:$0xff]
    %v315 = vld [vmem:[#allocation2 + $0x20] sm:$0xff]
    %v316 = vld [vmem:[#allocation2 + $0x28] sm:$0xff]
    %v317 = vld [vmem:[#allocation2 + $0x30] sm:$0xff]
    %v318 = vld [vmem:[#allocation2 + $0x38] sm:$0xff]
    %v319 = vld [vmem:[%s8] sm:$0x1]
    %v321 = vlaneseq
    %v322 = vshrl.u32 %v321, 7
    %v323 = vsub.s32 0, %v322
    %v324 = vrot.slane %v319, %v323
    %v327 = vsel %vm236, %v310, 0
    %329 = vmatprep.subr.mxu0 0.0
    %330 = vmatpush1.msra.mxu0 0.0
    %331 = vmatprep.subr.mxu0 0.0
    %332 = vmatpush1.msra.mxu0 0.0
    %333 = vmatprep.subr.mxu0 0.0
    %334 = vmatpush1.msra.mxu0 0.0
    %335 = vmatprep.subr.mxu0 0.0
    %336 = vmatpush1.msra.mxu0 0.0
    %337 = vmatprep.subr.mxu0 0.0
    %338 = vmatpush1.msra.mxu0 0.0
    %339 = vmatprep.subr.mxu0 0.0
    %340 = vmatpush1.msra.mxu0 0.0
    %341 = vmatprep.subr.mxu0 0.0
    %342 = vmatpush1.msra.mxu0 0.0
    %343 = vmatprep.subr.mxu0 0.0
    %344 = vmatpush1.msra.mxu0 0.0
    %345 = vmatprep.subr.mxu0 0.0
    %346 = vmatpush1.msra.mxu0 %v318
    %347 = vmatprep.subr.mxu0 0.0
    %348 = vmatpush1.msra.mxu0 %v317
    %349 = vmatprep.subr.mxu0 0.0
    %350 = vmatpush1.msra.mxu0 %v316
    %351 = vmatprep.subr.mxu0 0.0
    %352 = vmatpush1.msra.mxu0 %v315
    %353 = vmatprep.subr.mxu0 0.0
    %354 = vmatpush1.msra.mxu0 %v314
    %355 = vmatprep.subr.mxu0 0.0
    %356 = vmatpush1.msra.mxu0 %v313
    %357 = vmatprep.subr.mxu0 0.0
    %358 = vmatpush1.msra.mxu0 %v312
    %359 = vmatprep.subr.mxu0 0.0
    %360 = vmatpush1.msra.mxu0 %v311
    %361 = vmatprep.subr.mxu0 0.0
    %362 = vmatpush2.msra.mxu0 0.0
    %363 = vmatprep.subr.mxu0 0.0
    %364 = vmatpush2.msra.mxu0 0.0
    %365 = vmatprep.subr.mxu0 0.0
    %366 = vmatpush2.msra.mxu0 0.0
    %367 = vmatprep.subr.mxu0 0.0
    %368 = vmatpush2.msra.mxu0 0.0
    %369 = vmatprep.subr.mxu0 0.0
    %370 = vmatpush2.msra.mxu0 0.0
    %371 = vmatprep.subr.mxu0 0.0
    %372 = vmatpush2.msra.mxu0 0.0
    %373 = vmatprep.subr.mxu0 0.0
    %374 = vmatpush2.msra.mxu0 0.0
    %375 = vmatprep.subr.mxu0 0.0
    %376 = vmatpush2.msra.mxu0 0.0
    %377 = vmatprep.subr.mxu0 0.0
    %378 = vmatpush2.msra.mxu0 0.0
    %379 = vmatprep.subr.mxu0 0.0
    %380 = vmatpush2.msra.mxu0 0.0
    %381 = vmatprep.subr.mxu0 0.0
    %382 = vmatpush2.msra.mxu0 0.0
    %383 = vmatprep.subr.mxu0 0.0
    %384 = vmatpush2.msra.mxu0 0.0
    %385 = vmatprep.subr.mxu0 0.0
    %386 = vmatpush2.msra.mxu0 0.0
    %387 = vmatprep.subr.mxu0 0.0
    %388 = vmatpush2.msra.mxu0 0.0
    %389 = vmatprep.subr.mxu0 0.0
    %390 = vmatpush2.msra.mxu0 0.0
    %391 = vmatprep.subr.mxu0 0.0
    %392 = vmatpush2.msra.mxu0 0.0
    %393 = vmatprep.mubr.f32.mxu0 0.0
    %394 = vmatmul.mubr.f32.gmra.mxu0 %v327
    %v395 = vpop.f32.mrf.mxu0
    %v396 = vadd.f32 %v324, %v395
    %v397 = vpop.f32.mrf.mxu0
    %398 = vdwg.mxu0
    %v399 = vmax.f32 %v396, 0.0
    %v400 = vld [vmem:[%s9] sm:$0xff]
    %v401 = vld [vmem:[%s9 + $0x8] sm:$0xff]
    %v402 = vld [vmem:[%s9 + $0x10] sm:$0xff]
    %v403 = vld [vmem:[%s9 + $0x18] sm:$0xff]
    %v404 = vld [vmem:[%s9 + $0x20] sm:$0xff]
    %v405 = vld [vmem:[%s9 + $0x28] sm:$0xff]
    %v406 = vld [vmem:[%s9 + $0x30] sm:$0xff]
    %v407 = vld [vmem:[%s9 + $0x38] sm:$0xff]
    %v408 = vld [vmem:[%s10] sm:$0x1]
    %v410 = vlaneseq
    %v411 = vshrl.u32 %v410, 7
    %v412 = vsub.s32 0, %v411
    %v413 = vrot.slane %v408, %v412
    %v416 = vsel %vm236, %v399, 0
    %418 = vmatprep.subr.mxu0 0.0
    %419 = vmatpush1.msra.mxu0 0.0
    %420 = vmatprep.subr.mxu0 0.0
    %421 = vmatpush1.msra.mxu0 0.0
    %422 = vmatprep.subr.mxu0 0.0
    %423 = vmatpush1.msra.mxu0 0.0
    %424 = vmatprep.subr.mxu0 0.0
    %425 = vmatpush1.msra.mxu0 0.0
    %426 = vmatprep.subr.mxu0 0.0
    %427 = vmatpush1.msra.mxu0 0.0
    %428 = vmatprep.subr.mxu0 0.0
    %429 = vmatpush1.msra.mxu0 0.0
    %430 = vmatprep.subr.mxu0 0.0
    %431 = vmatpush1.msra.mxu0 0.0
    %432 = vmatprep.subr.mxu0 0.0
    %433 = vmatpush1.msra.mxu0 0.0
    %434 = vmatprep.subr.mxu0 0.0
    %435 = vmatpush1.msra.mxu0 %v407
    %436 = vmatprep.subr.mxu0 0.0
    %437 = vmatpush1.msra.mxu0 %v406
    %438 = vmatprep.subr.mxu0 0.0
    %439 = vmatpush1.msra.mxu0 %v405
    %440 = vmatprep.subr.mxu0 0.0
    %441 = vmatpush1.msra.mxu0 %v404
    %442 = vmatprep.subr.mxu0 0.0
    %443 = vmatpush1.msra.mxu0 %v403
    %444 = vmatprep.subr.mxu0 0.0
    %445 = vmatpush1.msra.mxu0 %v402
    %446 = vmatprep.subr.mxu0 0.0
    %447 = vmatpush1.msra.mxu0 %v401
    %448 = vmatprep.subr.mxu0 0.0
    %449 = vmatpush1.msra.mxu0 %v400
    %450 = vmatprep.subr.mxu0 0.0
    %451 = vmatpush2.msra.mxu0 0.0
    %452 = vmatprep.subr.mxu0 0.0
    %453 = vmatpush2.msra.mxu0 0.0
    %454 = vmatprep.subr.mxu0 0.0
    %455 = vmatpush2.msra.mxu0 0.0
    %456 = vmatprep.subr.mxu0 0.0
    %457 = vmatpush2.msra.mxu0 0.0
    %458 = vmatprep.subr.mxu0 0.0
    %459 = vmatpush2.msra.mxu0 0.0
    %460 = vmatprep.subr.mxu0 0.0
    %461 = vmatpush2.msra.mxu0 0.0
    %462 = vmatprep.subr.mxu0 0.0
    %463 = vmatpush2.msra.mxu0 0.0
    %464 = vmatprep.subr.mxu0 0.0
    %465 = vmatpush2.msra.mxu0 0.0
    %466 = vmatprep.subr.mxu0 0.0
    %467 = vmatpush2.msra.mxu0 0.0
    %468 = vmatprep.subr.mxu0 0.0
    %469 = vmatpush2.msra.mxu0 0.0
    %470 = vmatprep.subr.mxu0 0.0
    %471 = vmatpush2.msra.mxu0 0.0
    %472 = vmatprep.subr.mxu0 0.0
    %473 = vmatpush2.msra.mxu0 0.0
    %474 = vmatprep.subr.mxu0 0.0
    %475 = vmatpush2.msra.mxu0 0.0
    %476 = vmatprep.subr.mxu0 0.0
    %477 = vmatpush2.msra.mxu0 0.0
    %478 = vmatprep.subr.mxu0 0.0
    %479 = vmatpush2.msra.mxu0 0.0
    %480 = vmatprep.subr.mxu0 0.0
    %481 = vmatpush2.msra.mxu0 0.0
    %482 = vmatprep.mubr.f32.mxu0 0.0
    %483 = vmatmul.mubr.f32.gmra.mxu0 %v416
    %v484 = vpop.f32.mrf.mxu0
    %v485 = vadd.f32 %v413, %v484
    %v486 = vpop.f32.mrf.mxu0
    %487 = vdwg.mxu0
    %488 = vst.msk [vmem:[%s11] sm:$0xff] %vm56, %v485
    // Predicated region
    $region50: #{double_q_forward.1} parent=1 // pred_check
      _
    $region51: #{double_q_forward.1} parent=1 // pred_check_branch
      %490 = sbr.rel (0) target = $region53
    $region52: #{double_q_forward.1} parent=1 // pred_region
      _
    $region53: #{double_q_forward.1} parent=1 // pred_fallthru
      _
    // Predicated region
    $region54: #{double_q_forward.1} parent=1 // pred_check
      _
    $region55: #{double_q_forward.1} parent=1 // pred_check_branch
      %492 = sbr.rel (0) target = $region57
    $region56: #{double_q_forward.1} parent=1 // pred_region
      _
    $region57: #{double_q_forward.1} parent=1 // pred_fallthru
      _
    %493 = vsyncpa [#allocation3], 1

</llo_original>
